<compile_context>
chip_gen: v7x
topology: tpu7x:2x2x1
jax: 0.10.0
libtpu: 0.0.40
codegen_flags: <defaults>
</compile_context>

<pallas_src>
import jax
import jax.numpy as jnp
from jax.experimental import pallas as pl
from jax.experimental.pallas import tpu as pltpu

_LANE = 128
_SUBLANE = 8
# ~2 MiB per input block (dtype-aware row count).  Double-buffered by the
# BlockSpec pipeline this is ~4 MiB of VMEM -- comfortable on every generation.
_TARGET_BLOCK_BYTES = 2 * 1024 * 1024


def _round_up(n, m):
    return ((n + m - 1) // m) * m


def _round_down(n, m):
    return (n // m) * m


def get_product_of_tuple(arr):
    """Port of getProductOfTuple: product of the shape dims."""
    out = 1
    for num in arr.shape:
        out = out * num
    return out


# ----------------------------------------------------------------------------
# Forward pass (base-class semantics: pass-through around the abstract _forward)
# ----------------------------------------------------------------------------
def functional_module_forward(x, show=False):
    """FunctionalModule.forward.

    `_forward` is abstract in the base class, so the defined semantics are a
    shape/dtype-preserving pass-through.
    """
    if show:
        print('size before convolve: {}'.format(x.shape))
    # TODO(synk): concrete subclasses implement `_forward` (e.g. a conv); that
    # is where a real Pallas compute kernel belongs.
    out = x
    if show:
        print('size after convolve: {}'.format(out.shape))
    return out


# ----------------------------------------------------------------------------
# getFrequencyOfDeadNeurons: (# elements == 0) / (# elements)
# ----------------------------------------------------------------------------
def _choose_free_2d_view(shape, total, itemsize):
    """Pick a copy-free 2-D (rows, lanes) view of a contiguous array.

    Prefers the lane-dense (total // 128, 128) view; for ragged totals it uses
    the largest trailing-dims product (still a metadata-only reshape) that
    keeps >= 8 rows and fits an 8-row block in the block-byte budget.  Returns
    None for degenerate shapes.
    """
    if total % _LANE == 0 and total // _LANE >= _SUBLANE:
        return total // _LANE, _LANE
    best = None
    suffix = 1
    for d in reversed(shape):
        suffix *= d
        r = total // suffix
        if (r >= _SUBLANE and
                _round_up(suffix, _LANE) * itemsize * _SUBLANE
                <= _TARGET_BLOCK_BYTES):
            best = (r, suffix)
    return best


def get_frequency_of_dead_neurons(x, *, max_parallel=2):
    """Fraction of exact-zero elements of `x`, native-dtype compare, tiled
    Pallas reduction.  Zero-count exact in int32 (< 2**31 zeros); ratio f32."""
    total = get_product_of_tuple(x)
    itemsize = jnp.dtype(x.dtype).itemsize

    view = _choose_free_2d_view(x.shape, total, itemsize)
    if view is None:
        # TODO(synk): degenerate shapes (scalars, ragged rank-1 arrays, < 8
        # leading rows) have no copy-free lane-friendly 2-D view; use a plain
        # jnp reduction instead of paying a whole-tensor pad/copy.
        count = jnp.sum((x == 0).astype(jnp.int32))
        return count.astype(jnp.float32) / total

    rows, lanes = view
    slab = x.reshape(rows, lanes)      # metadata-only reshape: no HBM copy

    # Dtype-aware block sizing: ~_TARGET_BLOCK_BYTES per block regardless of
    # itemsize; multiple of 8 sublane rows so the in-kernel fold is tile-aligned.
    lane_bytes = _round_up(lanes, _LANE) * itemsize
    block_rows = max(_SUBLANE,
                     _round_down(_TARGET_BLOCK_BYTES // lane_bytes, _SUBLANE))
    tr = min(block_rows, _round_down(rows, _SUBLANE))

    nblocks = pl.cdiv(rows, tr)
    # Dual-TensorCore split (v7x): engage whenever there are >= 2 blocks; the
    # uneven-split overhang steps are predicated off inside the kernel and
    # their clamped index_map just re-reads the last real block.
    nchunks = max(1, min(max_parallel, nblocks))
    bpc = pl.cdiv(nblocks, nchunks)    # reduction steps per parallel chunk

    last = nblocks - 1
    tail_rows = rows - last * tr       # valid rows in the last block (1..tr)
    needs_mask = tail_rows != tr       # static: only the last block is ragged
    groups = tr // _SUBLANE

    def _fold(z):
        # (tr, lanes) f32 -> (8, lanes): sum groups of 8 sublane rows.  The
        # (groups, 8, lanes) reshape is a tile-aligned relabel, so this is
        # pure vreg-vreg VPU adds; no cross-lane XLU work in the hot loop.
        return jnp.sum(z.reshape(groups, _SUBLANE, lanes), axis=0)

    def kernel(x_ref, out_ref, acc_ref):
        b = pl.program_id(1)
        blk = pl.program_id(0) * bpc + b    # global block id

        @pl.when(b == 0)
        def _init():
            acc_ref[...] = jnp.zeros_like(acc_ref)

        # Fast path: full blocks, no row mask (bulk of the HBM stream).
        full_limit = last if needs_mask else nblocks
        if full_limit > 0:
            @pl.when(blk < full_limit)
            def _full():
                acc_ref[...] += _fold((x_ref[...] == 0).astype(jnp.float32))

        if needs_mask:
            # Only the single ragged last block pays for the iota row mask; it
            # also neutralizes the unspecified VMEM rows past the array end.
            @pl.when(blk == last)
            def _ragged():
                row_ids = jax.lax.broadcasted_iota(jnp.int32, (tr, lanes), 0)
                valid = row_ids < tail_rows
                acc_ref[...] += _fold(
                    (valid & (x_ref[...] == 0)).astype(jnp.float32))

        @pl.when(b == bpc - 1)
        def _finish():
            # Per-lane f32 partials are exact (<< 2**24 each); cast once and
            # store the accumulator lane-dense.  Cross-chunk reduce is on host.
            out_ref[...] = acc_ref[...].astype(jnp.int32)[None]

    partials = pl.pallas_call(
        kernel,
        out_shape=jax.ShapeDtypeStruct((nchunks, _SUBLANE, lanes), jnp.int32),
        grid=(nchunks, bpc),
        in_specs=[pl.BlockSpec(
            (tr, lanes),
            lambda p, b: (jnp.minimum(p * bpc + b, last), 0))],
        out_specs=pl.BlockSpec((1, _SUBLANE, lanes), lambda p, b: (p, 0, 0)),
        scratch_shapes=[pltpu.VMEM((_SUBLANE, lanes), jnp.float32)],
        compiler_params=pltpu.CompilerParams(
            dimension_semantics=("parallel", "arbitrary")),
    )(slab)

    zero_count = jnp.sum(partials)     # int32: exact below 2**31 zeros
    return zero_count.astype(jnp.float32) / total


# ----------------------------------------------------------------------------
if __name__ == "__main__":
    key = jax.random.PRNGKey(0)

    # Small NCHW input consistent with a conv-style module: (2, 4, 16, 16).
    x = jax.random.normal(key, (2, 4, 16, 16), dtype=jnp.float32)
    x = jnp.maximum(x, 0.0)   # ReLU -> exact zeros ("dead neurons")

    # Forward pass (abstract base class: pass-through semantics).
    y = functional_module_forward(x, show=False)
    y = jax.block_until_ready(y)
    assert y.shape == x.shape and y.dtype == x.dtype

    # Dead-neuron frequency via the Pallas reduction kernel.
    freq = jax.block_until_ready(get_frequency_of_dead_neurons(y))
    ref_freq = float(jnp.mean((y == 0.0).astype(jnp.float32)))
    assert abs(float(freq) - ref_freq) < 1e-6, (float(freq), ref_freq)

    # bf16 + ragged size (not a multiple of 128): copy-free (15, 77) view,
    # masked partial last block, dual-chunk split -- and no jnp.pad copy.
    x2 = jnp.maximum(
        jax.random.normal(jax.random.PRNGKey(1), (3, 5, 7, 11),
                          dtype=jnp.bfloat16), 0)
    freq2 = jax.block_until_ready(get_frequency_of_dead_neurons(x2))
    ref2 = float(jnp.mean((x2 == 0).astype(jnp.float32)))
    assert abs(float(freq2) - ref2) < 1e-6, (float(freq2), ref2)

    # Exactly one full 4096-row block (no masking, single chunk).
    x3 = jnp.maximum(
        jax.random.normal(jax.random.PRNGKey(2), (8, 64, 32, 32),
                          dtype=jnp.float32), 0.0)
    freq3 = jax.block_until_ready(get_frequency_of_dead_neurons(x3))
    ref3 = float(jnp.mean((x3 == 0.0).astype(jnp.float32)))
    assert abs(float(freq3) - ref3) < 1e-6, (float(freq3), ref3)

    # Two parallel chunks with a masked partial last block (rows=5000, tr=4096).
    x4 = jnp.maximum(
        jax.random.normal(jax.random.PRNGKey(3), (625, 32, 32),
                          dtype=jnp.float32), 0.0)
    freq4 = jax.block_until_ready(get_frequency_of_dead_neurons(x4))
    ref4 = float(jnp.mean((x4 == 0.0).astype(jnp.float32)))
    assert abs(float(freq4) - ref4) < 1e-6, (float(freq4), ref4)

    # Odd block count (rows=9192, tr=4096 -> 3 blocks): uneven dual-chunk split
    # with a predicated overhang step plus a masked ragged last block.
    x5 = jnp.maximum(
        jax.random.normal(jax.random.PRNGKey(4), (9192, 128),
                          dtype=jnp.float32), 0.0)
    freq5 = jax.block_until_ready(get_frequency_of_dead_neurons(x5))
    ref5 = float(jnp.mean((x5 == 0.0).astype(jnp.float32)))
    assert abs(float(freq5) - ref5) < 1e-6, (float(freq5), ref5)

    print("KERNEL_OK")
</pallas_src>

<mosaic_0001>
module attributes {stable_mosaic.version = 11 : i64} {
  func.func @kernel(%arg0: i32, %arg1: i32, %arg2: memref<16x128xf32, #tpu.memory_space<vmem>>, %arg3: memref<1x8x128xi32, #tpu.memory_space<vmem>>, %arg4: memref<8x128xf32, #tpu.memory_space<vmem>>) attributes {dimension_semantics = [#tpu.dimension_semantics<parallel>, #tpu.dimension_semantics<arbitrary>], iteration_bounds = array<i64: 1, 1>, scalar_prefetch = 0 : i64, scratch_operands = 1 : i64, tpu.core_type = #tpu.core_type<tc>, window_params = [{transform_indices = @transform_0, window_bounds = array<i64: 16, 128>}, {transform_indices = @transform_1, window_bounds = array<i64: 1, 8, 128>}]} {
    %c1_i32 = arith.constant 1 : i32
    %0 = arith.muli %arg0, %c1_i32 : i32
    %1 = arith.addi %0, %arg1 : i32
    %c0_i32 = arith.constant 0 : i32
    %2 = arith.cmpi eq, %arg1, %c0_i32 : i32
    %3 = arith.extui %2 : i1 to i32
    %c0_i32_0 = arith.constant 0 : i32
    %4 = arith.cmpi ne, %3, %c0_i32_0 : i32
    scf.if %4 {
      %cst = arith.constant 0.000000e+00 : f32
      %11 = vector.broadcast %cst : f32 to vector<8x128xf32>
      %c0 = arith.constant 0 : index
      %c0_5 = arith.constant 0 : index
      %12 = vector.load %arg4[%c0, %c0_5] : memref<8x128xf32, #tpu.memory_space<vmem>>, vector<8x128xf32>
      tpu.vector_store %arg4[%c0, %c0_5], %11 {strides = array<i32>} : memref<8x128xf32, #tpu.memory_space<vmem>>, vector<8x128xf32>,
    } else {
    }
    %c1_i32_1 = arith.constant 1 : i32
    %5 = arith.cmpi slt, %1, %c1_i32_1 : i32
    %6 = arith.extui %5 : i1 to i32
    %c0_i32_2 = arith.constant 0 : i32
    %7 = arith.cmpi ne, %6, %c0_i32_2 : i32
    scf.if %7 {
      %c0 = arith.constant 0 : index
      %c0_5 = arith.constant 0 : index
      %11 = vector.load %arg4[%c0, %c0_5] : memref<8x128xf32, #tpu.memory_space<vmem>>, vector<8x128xf32>
      %c0_6 = arith.constant 0 : index
      %c0_7 = arith.constant 0 : index
      %12 = vector.load %arg2[%c0_6, %c0_7] : memref<16x128xf32, #tpu.memory_space<vmem>>, vector<16x128xf32>
      %cst = arith.constant 0.000000e+00 : f32
      %13 = vector.broadcast %cst : f32 to vector<16x128xf32>
      %14 = arith.cmpf oeq, %12, %13 : vector<16x128xf32>
      %15 = arith.extui %14 : vector<16x128xi1> to vector<16x128xi32>
      %16 = arith.sitofp %15 : vector<16x128xi32> to vector<16x128xf32>
      %17 = vector.shape_cast %16 : vector<16x128xf32> to vector<2x8x128xf32>
      %cst_8 = arith.constant dense<0.000000e+00> : vector<8x128xf32>
      %18 = vector.multi_reduction <add>, %17, %cst_8 [0] : vector<2x8x128xf32> to vector<8x128xf32>
      %19 = arith.addf %11, %18 : vector<8x128xf32>
      %c0_9 = arith.constant 0 : index
      %c0_10 = arith.constant 0 : index
      %20 = vector.load %arg4[%c0_9, %c0_10] : memref<8x128xf32, #tpu.memory_space<vmem>>, vector<8x128xf32>
      tpu.vector_store %arg4[%c0_9, %c0_10], %19 {strides = array<i32>} : memref<8x128xf32, #tpu.memory_space<vmem>>, vector<8x128xf32>,
    } else {
    }
    %c0_i32_3 = arith.constant 0 : i32
    %8 = arith.cmpi eq, %arg1, %c0_i32_3 : i32
    %9 = arith.extui %8 : i1 to i32
    %c0_i32_4 = arith.constant 0 : i32
    %10 = arith.cmpi ne, %9, %c0_i32_4 : i32
    scf.if %10 {
      %c0 = arith.constant 0 : index
      %c0_5 = arith.constant 0 : index
      %11 = vector.load %arg4[%c0, %c0_5] : memref<8x128xf32, #tpu.memory_space<vmem>>, vector<8x128xf32>
      %12 = arith.fptosi %11 : vector<8x128xf32> to vector<8x128xi32>
      %13 = vector.shape_cast %12 : vector<8x128xi32> to vector<1x8x128xi32>
      %c0_6 = arith.constant 0 : index
      %c0_7 = arith.constant 0 : index
      %c0_8 = arith.constant 0 : index
      %14 = vector.load %arg3[%c0_6, %c0_7, %c0_8] : memref<1x8x128xi32, #tpu.memory_space<vmem>>, vector<1x8x128xi32>
      tpu.vector_store %arg3[%c0_6, %c0_7, %c0_8], %13 {strides = array<i32>} : memref<1x8x128xi32, #tpu.memory_space<vmem>>, vector<1x8x128xi32>,
    } else {
    }
    return
  }
  func.func @transform_0(%arg0: i32, %arg1: i32) -> (i32, i32) {
    %c1_i32 = arith.constant 1 : i32
    %0 = arith.muli %arg0, %c1_i32 : i32
    %1 = arith.addi %0, %arg1 : i32
    %c0_i32 = arith.constant 0 : i32
    %2 = arith.minsi %1, %c0_i32 : i32
    %c0_i32_0 = arith.constant 0 : i32
    %c0_i32_1 = arith.constant 0 : i32
    return %2, %c0_i32_0 : i32, i32
  }
  func.func @transform_1(%arg0: i32, %arg1: i32) -> (i32, i32, i32) {
    %c0_i32 = arith.constant 0 : i32
    %c0_i32_0 = arith.constant 0 : i32
    %c0_i32_1 = arith.constant 0 : i32
    return %arg0, %c0_i32, %c0_i32_0 : i32, i32, i32
  }
}

</mosaic_0001>

<llo_original>
// kernel: tpu_custom_call.1
$region0: #{tpu_custom_call.1}
  #allocation0 [shape = 'u32[]', space=smem, size = 0x4, offset = 0x4, fixed_abs, tag = 'smem constant byte address 0x4 - core index']
  #allocation1 [shape = 'u32[144,128]{1,0:T(1,128)}', space=vmem, size = 0x12000, scoped, tag = 'internal scratch']
  #allocation2 [shape = 'f32[8,128]{1,0:T(8,128)}', space=vmem, size = 0x1000, scoped, tag = 'scratch operand']
  %s0 = inlined_call_operand.hbm [shape: f32[16,128], index: 0, kind: input, shape index: {}]
  %s1 = inlined_call_operand.hbm [shape: s32[1,8,128], index: 1, kind: output, shape index: {}]
  %s2 = sld [smem:[#allocation0]]
  $region30: #{tpu_custom_call.1} parent=0
    _
  %s4 = ssub.s32 1, %s2
  %s5 = scalar_select 0, %s4, %s2
  $region1: #{tpu_custom_call.1} parent=0
    #allocation3 [shape = 'u8[8192]{0}', space=vmem, size = 0x2000, scoped, tag = 'input window, operand 0, single buffered']
    #allocation4 [shape = 's32[1]{0}', space=sflag, size = 0x4, scoped, tag = 'scoped memory for tpu_custom_call.1']
    #allocation5 [shape = 's32[1]{0}', space=sflag, size = 0x4, scoped, tag = 'scoped memory for tpu_custom_call.1']
    #allocation6 [shape = 'u8[4096]{0}', space=vmem, size = 0x1000, scoped, tag = 'output window, operand 0, single buffered']
    %6 = vsyncpa [#allocation4], 0
    %7 = vsyncpa [#allocation5], 0
    // Predicated region
    $region2: #{tpu_custom_call.1} parent=1 // pred_check
      _
    $region3: #{tpu_custom_call.1} parent=1 // pred_check_branch
      %9 = sbr.rel (0) target = $region5
    $region4: #{tpu_custom_call.1} parent=1 // pred_region
      %s10 = sadd.s32 0, 0
      %p11 = scmp.lt.s32.totalorder %s10, 0
      %s12 = scalar_select %p11, %s10, 0
      %s13 = smul.u32 2, %s12
      %s15 = ssub.s32 256, 256
      %16 = vsyncadd [#allocation4], %s15
      %s17 = smul.addr %s13, 128
      %s18 = scalar_lea.hbm %s0, %s17
      %s19 = sshll.u32 [#allocation3], 4
      %s20 = int_to_ptr.vmem [resolvable:$true] %s19
      %25 = dma.hbm_to_vmem [thread:$0]  %s18, 256, %s20, [#allocation4], 128, 128, 8
    $region5: #{tpu_custom_call.1} parent=1 // pred_fallthru
      _
    // Predicated region
    $region6: #{tpu_custom_call.1} parent=1 // pred_check
      _
    $region7: #{tpu_custom_call.1} parent=1 // pred_check_branch
      %27 = sbr.rel (0) target = $region9
    $region8: #{tpu_custom_call.1} parent=1 // pred_region
      %28 = dma.done [#allocation4], 256
    $region9: #{tpu_custom_call.1} parent=1 // pred_fallthru
      _
    %s29 = sadd.s32 0, 0
    %p30 = scmp.lt.s32.totalorder %s29, 0
    %s31 = scalar_select %p30, %s29, 0
    %s32 = smul.u32 2, %s31
    %s33 = sadd.s32 0, 0
    %p34 = scmp.eq.s32.totalorder 0, 0
    // Predicated region
    $region10: #{tpu_custom_call.1} parent=1 // pred_check
      %p35 = pneg %p34
    $region11: #{tpu_custom_call.1} parent=1 // pred_check_branch
      %37 = sbr.rel (%p35) target = $region13
    $region12: #{tpu_custom_call.1} parent=1 // pred_region
      %38 = vst [vmem:[#allocation2] sm:$0xff] 0.0
    $region13: #{tpu_custom_call.1} parent=1 // pred_fallthru
      _
    %p39 = scmp.lt.s32.totalorder %s33, 1
    // Predicated region
    $region14: #{tpu_custom_call.1} parent=1 // pred_check
      %p40 = pneg %p39
    $region15: #{tpu_custom_call.1} parent=1 // pred_check_branch
      %42 = sbr.rel (%p40) target = $region17
    $region16: #{tpu_custom_call.1} parent=1 // pred_region
      %v43 = vld [vmem:[#allocation2] sm:$0xff]
      %v44 = vld [vmem:[#allocation3] sm:$0xff]
      %v45 = vld [vmem:[#allocation3 + $0x8] sm:$0xff]
      %vm46 = vcmp.eq.f32.partialorder %v44, 0.0
      %vm47 = vcmp.eq.f32.partialorder %v45, 0.0
      %v48 = vsel %vm46, 1, 0
      %v49 = vsel %vm47, 1, 0
      %v50 = vcvt.s32.f32 %v48
      %v51 = vcvt.s32.f32 %v49
      %v52 = vadd.f32 %v50, %v51
      %v53 = vadd.f32 %v43, %v52
      %54 = vst [vmem:[#allocation2] sm:$0xff] %v53
    $region17: #{tpu_custom_call.1} parent=1 // pred_fallthru
      _
    // Predicated region
    $region18: #{tpu_custom_call.1} parent=1 // pred_check
      %p55 = pneg %p34
    $region19: #{tpu_custom_call.1} parent=1 // pred_check_branch
      %57 = sbr.rel (%p55) target = $region21
    $region20: #{tpu_custom_call.1} parent=1 // pred_region
      %v58 = vld [vmem:[#allocation2] sm:$0xff]
      %v59 = vcvt.f32.s32.to.zero.pseudo %v58
      %60 = vst [vmem:[#allocation6] sm:$0xff] %v59
    $region21: #{tpu_custom_call.1} parent=1 // pred_fallthru
      _
    // Predicated region
    $region22: #{tpu_custom_call.1} parent=1 // pred_check
      _
    $region23: #{tpu_custom_call.1} parent=1 // pred_check_branch
      %62 = sbr.rel (0) target = $region25
    $region24: #{tpu_custom_call.1} parent=1 // pred_region
      %s64 = ssub.s32 128, 128
      %65 = vsyncadd [#allocation5], %s64
      %s67 = sshll.u32 [#allocation6], 4
      %s68 = int_to_ptr.vmem [resolvable:$true] %s67
      %70 = dma.vmem_to_hbm [thread:$0]  %s68, 128, %s1, [#allocation5]
    $region25: #{tpu_custom_call.1} parent=1 // pred_fallthru
      _
    // Predicated region
    $region26: #{tpu_custom_call.1} parent=1 // pred_check
      _
    $region27: #{tpu_custom_call.1} parent=1 // pred_check_branch
      %72 = sbr.rel (0) target = $region29
    $region28: #{tpu_custom_call.1} parent=1 // pred_region
      %73 = dma.done [#allocation5], 128
    $region29: #{tpu_custom_call.1} parent=1 // pred_fallthru
      _
    %74 = vsyncpa [#allocation4], 1
    %75 = vsyncpa [#allocation5], 1

</llo_original>
